<compile_context>
chip_gen: v5e
topology: v5e:2x2
jax: 0.10.0
libtpu: 0.0.40
codegen_flags: <defaults>
</compile_context>

<pallas_src>
import functools

import jax
import jax.numpy as jnp
from jax.experimental import pallas as pl
from jax.experimental.pallas import tpu as pltpu


def _round_up(x, m):
    return ((x + m - 1) // m) * m


def _fused_mlp_kernel(x_ref, *refs, num_layers, compute_dtype):
    """Whole-MLP forward on one batch tile.

    refs = (w_0, b_0, w_1, b_1, ..., w_{L-1}, b_{L-1}, o_ref).
    Weights are already in compute_dtype (bf16 by default), biases in f32.
    All weight/bias blocks are VMEM-resident (constant block index, single
    buffered). Hidden layers get ReLU, the last layer does not.
    """
    o_ref = refs[-1]
    h = x_ref[...].astype(compute_dtype)                       # (tm, D0_pad)
    for l in range(num_layers):
        w = refs[2 * l][...]                                   # (Dl_pad, Dl1_pad) compute_dtype
        b = refs[2 * l + 1][...]                               # (1,      Dl1_pad) f32
        acc = jnp.dot(h, w, preferred_element_type=jnp.float32)  # MXU, f32 acc
        acc = acc + b                                          # f32 epilogue (VPU)
        if l < num_layers - 1:
            acc = jnp.maximum(acc, 0.0)                        # ReLU (f32)
            h = acc.astype(compute_dtype)                      # carry in compute_dtype
        else:
            h = acc
    o_ref[...] = h.astype(o_ref.dtype)


@functools.partial(jax.jit, static_argnames=("d_out", "tile_m", "compute_dtype"))
def mlp_forward(x, padded_weights, padded_biases, *, d_out, tile_m=256,
                compute_dtype=jnp.bfloat16):
    """x: (B, D_in) f32. padded_weights[l]: (Dl_pad, Dl1_pad) in compute_dtype,
    padded_biases[l]: (1, Dl1_pad) f32 — pre-padded to lane-dense multiples of 128."""
    B, D_in = x.shape
    num_layers = len(padded_weights)
    dpad = [padded_weights[0].shape[0]] + [w.shape[1] for w in padded_weights]

    # Batch tiling (sublane axis): <= tile_m rows per step, >= 8.
    tm = min(tile_m, _round_up(B, 8))
    # Force >= 2 grid steps when B spans more than one minimal tile so the
    # "parallel" batch axis actually shards across both v7x TensorCores.
    if B > 8 and pl.cdiv(B, tm) < 2:
        tm = max(8, _round_up(pl.cdiv(B, 2), 8))
    B_pad = _round_up(B, tm)
    grid = (B_pad // tm,)

    # Pad x (padded rows/cols contribute exactly 0 through every layer:
    # zero weight/bias pads, ReLU(0)=0); result is sliced at the end.
    x_p = jnp.zeros((B_pad, dpad[0]), x.dtype).at[:B, :D_in].set(x)

    operands = [x_p]
    in_specs = [pl.BlockSpec((tm, dpad[0]), lambda i: (i, 0))]
    for l in range(num_layers):
        operands += [padded_weights[l], padded_biases[l]]
        # Grid-invariant blocks: single-buffer (no need to double-buffer
        # something that never changes across grid steps).
        in_specs += [
            pl.BlockSpec((dpad[l], dpad[l + 1]), lambda i: (0, 0),
                         pipeline_mode=pl.Buffered(1)),
            pl.BlockSpec((1, dpad[l + 1]), lambda i: (0, 0),
                         pipeline_mode=pl.Buffered(1)),
        ]
    out_spec = pl.BlockSpec((tm, dpad[-1]), lambda i: (i, 0))

    # Generation-aware VMEM budget: physical capacity minus ~8 MiB headroom.
    try:
        vmem_cap = int(pltpu.get_tpu_info().vmem_capacity_bytes)
    except Exception:
        vmem_cap = 64 * 1024 * 1024          # conservative fallback (v7x-sized)
    vmem_cap = max(vmem_cap - 8 * 1024 * 1024, 16 * 1024 * 1024)

    resident = sum(int(w.size) * w.dtype.itemsize for w in padded_weights) \
             + sum(int(b.size) * b.dtype.itemsize for b in padded_biases)
    w_item = jnp.dtype(compute_dtype).itemsize
    live = tm * max(dpad) * (4 + w_item)                       # f32 acc + h
    buffered = 2 * tm * dpad[0] * x.dtype.itemsize + 2 * tm * dpad[-1] * 4
    vmem_limit = int(min(max(32 * 1024 * 1024,
                             2 * (resident + live + buffered)), vmem_cap))

    flops = 2 * B_pad * sum(dpad[l] * dpad[l + 1] for l in range(num_layers))
    bytes_accessed = int(x_p.size) * x_p.dtype.itemsize \
                   + B_pad * dpad[-1] * x.dtype.itemsize + resident

    kernel = functools.partial(_fused_mlp_kernel,
                               num_layers=num_layers,
                               compute_dtype=compute_dtype)
    out_p = pl.pallas_call(
        kernel,
        out_shape=jax.ShapeDtypeStruct((B_pad, dpad[-1]), x.dtype),
        grid=grid,
        in_specs=in_specs,
        out_specs=out_spec,
        compiler_params=pltpu.CompilerParams(
            dimension_semantics=("parallel",),   # batch tiles -> both TCs on v7x
            vmem_limit_bytes=vmem_limit,
        ),
        cost_estimate=pl.CostEstimate(flops=flops, transcendentals=0,
                                      bytes_accessed=bytes_accessed),
    )(*operands)
    return out_p[:B, :d_out]


class MLPPallas:
    """Mirrors the PyTorch MLP forward: num_hidden_layers x (Linear -> ReLU),
    followed by an output Linear (no nonlinearity).

    Weights are stored (in_features, out_features) so the kernel does x @ W.
    Padded + pre-cast copies are built once here, not per forward call.
    """

    def __init__(self, input_dim, output_dim, num_hidden_layers,
                 num_hidden_units, key, compute_dtype=jnp.bfloat16):
        self.compute_dtype = compute_dtype
        self.output_dim = output_dim

        dims = []
        for idx in range(num_hidden_layers):
            d_in = input_dim if idx == 0 else num_hidden_units
            dims.append((d_in, num_hidden_units))
        dims.append((num_hidden_units, output_dim))

        dpad = [_round_up(input_dim, 128)] + [_round_up(d_o, 128) for _, d_o in dims]

        self.raw_weights, self.raw_biases = [], []
        self.padded_weights, self.padded_biases = [], []
        for i, (d_in, d_o) in enumerate(dims):
            kw, kb = jax.random.split(jax.random.fold_in(key, i))
            bound = 1.0 / (float(d_in) ** 0.5)   # matches torch Linear init range
            w = jax.random.uniform(kw, (d_in, d_o), jnp.float32, -bound, bound)
            b = jax.random.uniform(kb, (d_o,), jnp.float32, -bound, bound)
            self.raw_weights.append(w)
            self.raw_biases.append(b)
            wp = jnp.zeros((dpad[i], dpad[i + 1]), jnp.float32).at[:d_in, :d_o].set(w)
            bp = jnp.zeros((1, dpad[i + 1]), jnp.float32).at[0, :d_o].set(b)
            self.padded_weights.append(wp.astype(compute_dtype))  # bf16 MXU feed
            self.padded_biases.append(bp)                         # f32 epilogue

    def __call__(self, x, *, tile_m=256):
        return mlp_forward(x, self.padded_weights, self.padded_biases,
                           d_out=self.output_dim, tile_m=tile_m,
                           compute_dtype=self.compute_dtype)


if __name__ == "__main__":
    key = jax.random.PRNGKey(0)
    k_x, k_p = jax.random.split(key)

    batch = 8
    input_dim = 32
    output_dim = 16
    num_hidden_layers = 2
    num_hidden_units = 32

    x = jax.random.normal(k_x, (batch, input_dim), jnp.float32)

    # Default path: bf16 MXU inputs, f32 accumulation/epilogue.
    mlp_bf16 = MLPPallas(input_dim, output_dim, num_hidden_layers,
                         num_hidden_units, k_p, compute_dtype=jnp.bfloat16)
    out_bf16 = jax.block_until_ready(mlp_bf16(x))

    # Full-f32 path for a tight numerical check (same raw params: same key).
    mlp_f32 = MLPPallas(input_dim, output_dim, num_hidden_layers,
                        num_hidden_units, k_p, compute_dtype=jnp.float32)
    out_f32 = jax.block_until_ready(mlp_f32(x))

    # Reference in plain JAX (exact same unpadded params).
    ref = x
    for i in range(num_hidden_layers):
        ref = jnp.maximum(ref @ mlp_f32.raw_weights[i] + mlp_f32.raw_biases[i], 0.0)
    ref = ref @ mlp_f32.raw_weights[-1] + mlp_f32.raw_biases[-1]

    assert out_f32.shape == (batch, output_dim)
    assert out_bf16.shape == (batch, output_dim)
    # Tolerance guarded by compute_dtype: tight for f32, loose for bf16 MXU inputs.
    assert jnp.allclose(out_f32, ref, atol=1e-4, rtol=1e-4)
    assert jnp.allclose(out_bf16, ref, atol=5e-2, rtol=5e-2)

    print("KERNEL_OK")
</pallas_src>

<mosaic_0001>
module attributes {stable_mosaic.version = 11 : i64} {
  func.func @_fused_mlp_kernel(%arg0: i32, %arg1: memref<8x128xf32, #tpu.memory_space<vmem>>, %arg2: memref<128x128xbf16, #tpu.memory_space<vmem>>, %arg3: memref<1x128xf32, #tpu.memory_space<vmem>>, %arg4: memref<128x128xbf16, #tpu.memory_space<vmem>>, %arg5: memref<1x128xf32, #tpu.memory_space<vmem>>, %arg6: memref<128x128xbf16, #tpu.memory_space<vmem>>, %arg7: memref<1x128xf32, #tpu.memory_space<vmem>>, %arg8: memref<8x128xf32, #tpu.memory_space<vmem>>) attributes {dimension_semantics = [#tpu.dimension_semantics<parallel>], iteration_bounds = array<i64: 1>, scalar_prefetch = 0 : i64, scratch_operands = 0 : i64, tpu.core_type = #tpu.core_type<tc>, window_params = [{transform_indices = @transform_0, window_bounds = array<i64: 8, 128>}, {pipeline_mode = #tpu.pipeline_mode<synchronous>, transform_indices = @transform_1, window_bounds = array<i64: 128, 128>}, {pipeline_mode = #tpu.pipeline_mode<synchronous>, transform_indices = @transform_2, window_bounds = array<i64: 1, 128>}, {pipeline_mode = #tpu.pipeline_mode<synchronous>, transform_indices = @transform_3, window_bounds = array<i64: 128, 128>}, {pipeline_mode = #tpu.pipeline_mode<synchronous>, transform_indices = @transform_4, window_bounds = array<i64: 1, 128>}, {pipeline_mode = #tpu.pipeline_mode<synchronous>, transform_indices = @transform_5, window_bounds = array<i64: 128, 128>}, {pipeline_mode = #tpu.pipeline_mode<synchronous>, transform_indices = @transform_6, window_bounds = array<i64: 1, 128>}, {transform_indices = @transform_7, window_bounds = array<i64: 8, 128>}]} {
    %c0 = arith.constant 0 : index
    %c0_0 = arith.constant 0 : index
    %0 = vector.load %arg1[%c0, %c0_0] : memref<8x128xf32, #tpu.memory_space<vmem>>, vector<8x128xf32>
    %1 = arith.truncf %0 : vector<8x128xf32> to vector<8x128xbf16>
    %c0_1 = arith.constant 0 : index
    %c0_2 = arith.constant 0 : index
    %2 = vector.load %arg2[%c0_1, %c0_2] : memref<128x128xbf16, #tpu.memory_space<vmem>>, vector<128x128xbf16>
    %c0_3 = arith.constant 0 : index
    %c0_4 = arith.constant 0 : index
    %3 = vector.load %arg3[%c0_3, %c0_4] : memref<1x128xf32, #tpu.memory_space<vmem>>, vector<1x128xf32>
    %cst = arith.constant dense<0.000000e+00> : vector<8x128xf32>
    %4 = tpu.matmul %1, %2, %cst {dimension_numbers = #tpu.dot_dimension_numbers<[1], [0], [0], [1], [0, 0, 1, 1], [], []>} : vector<8x128xbf16>, vector<128x128xbf16>, vector<8x128xf32> -> vector<8x128xf32>
    %5 = vector.broadcast %3 : vector<1x128xf32> to vector<8x128xf32>
    %6 = arith.addf %4, %5 : vector<8x128xf32>
    %cst_5 = arith.constant 0.000000e+00 : f32
    %7 = vector.broadcast %cst_5 : f32 to vector<8x128xf32>
    %8 = arith.maximumf %6, %7 : vector<8x128xf32>
    %9 = arith.truncf %8 : vector<8x128xf32> to vector<8x128xbf16>
    %c0_6 = arith.constant 0 : index
    %c0_7 = arith.constant 0 : index
    %10 = vector.load %arg4[%c0_6, %c0_7] : memref<128x128xbf16, #tpu.memory_space<vmem>>, vector<128x128xbf16>
    %c0_8 = arith.constant 0 : index
    %c0_9 = arith.constant 0 : index
    %11 = vector.load %arg5[%c0_8, %c0_9] : memref<1x128xf32, #tpu.memory_space<vmem>>, vector<1x128xf32>
    %cst_10 = arith.constant dense<0.000000e+00> : vector<8x128xf32>
    %12 = tpu.matmul %9, %10, %cst_10 {dimension_numbers = #tpu.dot_dimension_numbers<[1], [0], [0], [1], [0, 0, 1, 1], [], []>} : vector<8x128xbf16>, vector<128x128xbf16>, vector<8x128xf32> -> vector<8x128xf32>
    %13 = vector.broadcast %11 : vector<1x128xf32> to vector<8x128xf32>
    %14 = arith.addf %12, %13 : vector<8x128xf32>
    %cst_11 = arith.constant 0.000000e+00 : f32
    %15 = vector.broadcast %cst_11 : f32 to vector<8x128xf32>
    %16 = arith.maximumf %14, %15 : vector<8x128xf32>
    %17 = arith.truncf %16 : vector<8x128xf32> to vector<8x128xbf16>
    %c0_12 = arith.constant 0 : index
    %c0_13 = arith.constant 0 : index
    %18 = vector.load %arg6[%c0_12, %c0_13] : memref<128x128xbf16, #tpu.memory_space<vmem>>, vector<128x128xbf16>
    %c0_14 = arith.constant 0 : index
    %c0_15 = arith.constant 0 : index
    %19 = vector.load %arg7[%c0_14, %c0_15] : memref<1x128xf32, #tpu.memory_space<vmem>>, vector<1x128xf32>
    %cst_16 = arith.constant dense<0.000000e+00> : vector<8x128xf32>
    %20 = tpu.matmul %17, %18, %cst_16 {dimension_numbers = #tpu.dot_dimension_numbers<[1], [0], [0], [1], [0, 0, 1, 1], [], []>} : vector<8x128xbf16>, vector<128x128xbf16>, vector<8x128xf32> -> vector<8x128xf32>
    %21 = vector.broadcast %19 : vector<1x128xf32> to vector<8x128xf32>
    %22 = arith.addf %20, %21 : vector<8x128xf32>
    %c0_17 = arith.constant 0 : index
    %c0_18 = arith.constant 0 : index
    %23 = vector.load %arg8[%c0_17, %c0_18] : memref<8x128xf32, #tpu.memory_space<vmem>>, vector<8x128xf32>
    tpu.vector_store %arg8[%c0_17, %c0_18], %22 {strides = array<i32>} : memref<8x128xf32, #tpu.memory_space<vmem>>, vector<8x128xf32>,
    return
  }
  func.func @transform_0(%arg0: i32) -> (i32, i32) {
    %c0_i32 = arith.constant 0 : i32
    %c0_i32_0 = arith.constant 0 : i32
    return %arg0, %c0_i32 : i32, i32
  }
  func.func @transform_1(%arg0: i32) -> (i32, i32) {
    %c0_i32 = arith.constant 0 : i32
    %c0_i32_0 = arith.constant 0 : i32
    %c0_i32_1 = arith.constant 0 : i32
    return %c0_i32, %c0_i32_0 : i32, i32
  }
  func.func @transform_2(%arg0: i32) -> (i32, i32) {
    %c0_i32 = arith.constant 0 : i32
    %c0_i32_0 = arith.constant 0 : i32
    %c0_i32_1 = arith.constant 0 : i32
    return %c0_i32, %c0_i32_0 : i32, i32
  }
  func.func @transform_3(%arg0: i32) -> (i32, i32) {
    %c0_i32 = arith.constant 0 : i32
    %c0_i32_0 = arith.constant 0 : i32
    %c0_i32_1 = arith.constant 0 : i32
    return %c0_i32, %c0_i32_0 : i32, i32
  }
  func.func @transform_4(%arg0: i32) -> (i32, i32) {
    %c0_i32 = arith.constant 0 : i32
    %c0_i32_0 = arith.constant 0 : i32
    %c0_i32_1 = arith.constant 0 : i32
    return %c0_i32, %c0_i32_0 : i32, i32
  }
  func.func @transform_5(%arg0: i32) -> (i32, i32) {
    %c0_i32 = arith.constant 0 : i32
    %c0_i32_0 = arith.constant 0 : i32
    %c0_i32_1 = arith.constant 0 : i32
    return %c0_i32, %c0_i32_0 : i32, i32
  }
  func.func @transform_6(%arg0: i32) -> (i32, i32) {
    %c0_i32 = arith.constant 0 : i32
    %c0_i32_0 = arith.constant 0 : i32
    %c0_i32_1 = arith.constant 0 : i32
    return %c0_i32, %c0_i32_0 : i32, i32
  }
  func.func @transform_7(%arg0: i32) -> (i32, i32) {
    %c0_i32 = arith.constant 0 : i32
    %c0_i32_0 = arith.constant 0 : i32
    return %arg0, %c0_i32 : i32, i32
  }
}

</mosaic_0001>

<llo_original>
// kernel: mlp_forward.1
$region0: #{mlp_forward.1}
  #allocation0 [shape = 'u32[]', space=smem, size = 0x4, offset = 0x4, fixed_abs, tag = 'smem constant byte address 0x4 - core index']
  #allocation1 [shape = 'u32[72,128]{1,0:T(1,128)}', space=vmem, size = 0x9000, scoped, tag = 'internal scratch']
  %s0 = inlined_call_operand.vmem [shape: f32[8,128], index: 0, kind: input, shape index: {}]
  %s1 = inlined_call_operand.hbm [shape: bf16[128,128], index: 1, kind: input, shape index: {}]
  %s2 = inlined_call_operand.vmem [shape: f32[1,128], index: 2, kind: input, shape index: {}]
  %s3 = inlined_call_operand.hbm [shape: bf16[128,128], index: 3, kind: input, shape index: {}]
  %s4 = inlined_call_operand.vmem [shape: f32[1,128], index: 4, kind: input, shape index: {}]
  %s5 = inlined_call_operand.hbm [shape: bf16[128,128], index: 5, kind: input, shape index: {}]
  %s6 = inlined_call_operand.vmem [shape: f32[1,128], index: 6, kind: input, shape index: {}]
  %s7 = inlined_call_operand.hbm [shape: f32[8,128], index: 7, kind: output, shape index: {}]
  %s8 = sld [smem:[#allocation0]]
  $region50: #{mlp_forward.1} parent=0
    _
  %s10 = ssub.s32 1, %s8
  %s11 = scalar_select 0, %s10, %s8
  $region1: #{mlp_forward.1} parent=0
    #allocation2 [shape = 'u8[32768]{0}', space=vmem, size = 0x8000, scoped, tag = 'input window, operand 1, single buffered']
    #allocation3 [shape = 's32[1]{0}', space=sflag, size = 0x4, scoped, tag = 'scoped memory for mlp_forward.1']
    #allocation4 [shape = 's32[1]{0}', space=sflag, size = 0x4, scoped, tag = 'scoped memory for mlp_forward.1']
    #allocation5 [shape = 'u8[32768]{0}', space=vmem, size = 0x8000, scoped, tag = 'input window, operand 3, single buffered']
    #allocation6 [shape = 's32[1]{0}', space=sflag, size = 0x4, scoped, tag = 'scoped memory for mlp_forward.1']
    #allocation7 [shape = 'u8[32768]{0}', space=vmem, size = 0x8000, scoped, tag = 'input window, operand 5, single buffered']
    #allocation8 [shape = 'u8[4096]{0}', space=vmem, size = 0x1000, scoped, tag = 'output window, operand 0, single buffered']
    %12 = vsyncpa [#allocation3], 0
    %13 = vsyncpa [#allocation6], 0
    %14 = vsyncpa [#allocation4], 0
    // Predicated region
    $region2: #{mlp_forward.1} parent=1 // pred_check
      _
    $region3: #{mlp_forward.1} parent=1 // pred_check_branch
      %16 = sbr.rel (0) target = $region5
    $region4: #{mlp_forward.1} parent=1 // pred_region
      _
    $region5: #{mlp_forward.1} parent=1 // pred_fallthru
      _
    // Predicated region
    $region6: #{mlp_forward.1} parent=1 // pred_check
      _
    $region7: #{mlp_forward.1} parent=1 // pred_check_branch
      %18 = sbr.rel (0) target = $region9
    $region8: #{mlp_forward.1} parent=1 // pred_region
      %20 = vsyncadd [#allocation3], 0
      %s21 = sshll.u32 %s1, 4
      %s22 = int_to_ptr.hbm [resolvable:$true] %s21
      %s23 = sshll.u32 [#allocation2], 4
      %s24 = int_to_ptr.vmem [resolvable:$true] %s23
      %29 = dma.hbm_to_vmem [thread:$0]  %s22, 1024, %s24, [#allocation3], 64, 64, 4
    $region9: #{mlp_forward.1} parent=1 // pred_fallthru
      _
    // Predicated region
    $region10: #{mlp_forward.1} parent=1 // pred_check
      _
    $region11: #{mlp_forward.1} parent=1 // pred_check_branch
      %31 = sbr.rel (0) target = $region13
    $region12: #{mlp_forward.1} parent=1 // pred_region
      _
    $region13: #{mlp_forward.1} parent=1 // pred_fallthru
      _
    // Predicated region
    $region14: #{mlp_forward.1} parent=1 // pred_check
      _
    $region15: #{mlp_forward.1} parent=1 // pred_check_branch
      %33 = sbr.rel (0) target = $region17
    $region16: #{mlp_forward.1} parent=1 // pred_region
      %35 = vsyncadd [#allocation6], 0
      %s36 = sshll.u32 %s3, 4
      %s37 = int_to_ptr.hbm [resolvable:$true] %s36
      %s38 = sshll.u32 [#allocation5], 4
      %s39 = int_to_ptr.vmem [resolvable:$true] %s38
      %44 = dma.hbm_to_vmem [thread:$0]  %s37, 1024, %s39, [#allocation6], 64, 64, 4
    $region17: #{mlp_forward.1} parent=1 // pred_fallthru
      _
    // Predicated region
    $region18: #{mlp_forward.1} parent=1 // pred_check
      _
    $region19: #{mlp_forward.1} parent=1 // pred_check_branch
      %46 = sbr.rel (0) target = $region21
    $region20: #{mlp_forward.1} parent=1 // pred_region
      _
    $region21: #{mlp_forward.1} parent=1 // pred_fallthru
      _
    // Predicated region
    $region22: #{mlp_forward.1} parent=1 // pred_check
      _
    $region23: #{mlp_forward.1} parent=1 // pred_check_branch
      %48 = sbr.rel (0) target = $region25
    $region24: #{mlp_forward.1} parent=1 // pred_region
      %50 = vsyncadd [#allocation6], 0
      %s51 = sshll.u32 %s5, 4
      %s52 = int_to_ptr.hbm [resolvable:$true] %s51
      %s53 = sshll.u32 [#allocation7], 4
      %s54 = int_to_ptr.vmem [resolvable:$true] %s53
      %59 = dma.hbm_to_vmem [thread:$0]  %s52, 1024, %s54, [#allocation6], 64, 64, 4
    $region25: #{mlp_forward.1} parent=1 // pred_fallthru
      _
    // Predicated region
    $region26: #{mlp_forward.1} parent=1 // pred_check
      _
    $region27: #{mlp_forward.1} parent=1 // pred_check_branch
      %61 = sbr.rel (0) target = $region29
    $region28: #{mlp_forward.1} parent=1 // pred_region
      _
    $region29: #{mlp_forward.1} parent=1 // pred_fallthru
      _
    // Predicated region
    $region30: #{mlp_forward.1} parent=1 // pred_check
      _
    $region31: #{mlp_forward.1} parent=1 // pred_check_branch
      %63 = sbr.rel (0) target = $region33
    $region32: #{mlp_forward.1} parent=1 // pred_region
      %65 = dma.done [#allocation3], 1024
    $region33: #{mlp_forward.1} parent=1 // pred_fallthru
      _
    // Predicated region
    $region34: #{mlp_forward.1} parent=1 // pred_check
      _
    $region35: #{mlp_forward.1} parent=1 // pred_check_branch
      %67 = sbr.rel (0) target = $region37
    $region36: #{mlp_forward.1} parent=1 // pred_region
      %69 = dma.done [#allocation6], 1024
    $region37: #{mlp_forward.1} parent=1 // pred_fallthru
      _
    // Predicated region
    $region38: #{mlp_forward.1} parent=1 // pred_check
      _
    $region39: #{mlp_forward.1} parent=1 // pred_check_branch
      %71 = sbr.rel (0) target = $region41
    $region40: #{mlp_forward.1} parent=1 // pred_region
      %73 = dma.done [#allocation6], 1024
    $region41: #{mlp_forward.1} parent=1 // pred_fallthru
      _
    %v74 = vld [vmem:[%s0] sm:$0xff]
    %v75 = vpack.c.bf16 %v74, %v74
    %v76 = vld [vmem:[#allocation2] sm:$0xf]
    %v77 = vld [vmem:[#allocation2 + $0x4] sm:$0xf]
    %v78 = vld [vmem:[#allocation2 + $0x8] sm:$0xf]
    %v79 = vld [vmem:[#allocation2 + $0xc] sm:$0xf]
    %v80 = vld [vmem:[#allocation2 + $0x10] sm:$0xf]
    %v81 = vld [vmem:[#allocation2 + $0x14] sm:$0xf]
    %v82 = vld [vmem:[#allocation2 + $0x18] sm:$0xf]
    %v83 = vld [vmem:[#allocation2 + $0x1c] sm:$0xf]
    %v84 = vld [vmem:[#allocation2 + $0x20] sm:$0xf]
    %v85 = vld [vmem:[#allocation2 + $0x24] sm:$0xf]
    %v86 = vld [vmem:[#allocation2 + $0x28] sm:$0xf]
    %v87 = vld [vmem:[#allocation2 + $0x2c] sm:$0xf]
    %v88 = vld [vmem:[#allocation2 + $0x30] sm:$0xf]
    %v89 = vld [vmem:[#allocation2 + $0x34] sm:$0xf]
    %v90 = vld [vmem:[#allocation2 + $0x38] sm:$0xf]
    %v91 = vld [vmem:[#allocation2 + $0x3c] sm:$0xf]
    %v92 = vld [vmem:[%s2] sm:$0x1]
    %v94 = vperm.slane %v92, 0
    %v112 = vunpack.c.l.b16 %v76
    %v113 = vunpack.c.l.b16 %v77
    %v114 = vunpack.c.l.b16 %v78
    %v115 = vunpack.c.l.b16 %v79
    %v116 = vunpack.c.l.b16 %v80
    %v117 = vunpack.c.l.b16 %v81
    %v118 = vunpack.c.l.b16 %v82
    %v119 = vunpack.c.l.b16 %v83
    %v120 = vunpack.c.l.b16 %v84
    %v121 = vunpack.c.l.b16 %v85
    %v122 = vunpack.c.l.b16 %v86
    %v123 = vunpack.c.l.b16 %v87
    %v124 = vunpack.c.l.b16 %v88
    %v125 = vunpack.c.l.b16 %v89
    %v126 = vunpack.c.l.b16 %v90
    %v127 = vunpack.c.l.b16 %v91
    %v128 = vpack.c.b16 %v113, %v112
    %v129 = vpack.c.b16 %v115, %v114
    %v130 = vpack.c.b16 %v117, %v116
    %v131 = vpack.c.b16 %v119, %v118
    %v132 = vpack.c.b16 %v121, %v120
    %v133 = vpack.c.b16 %v123, %v122
    %v134 = vpack.c.b16 %v125, %v124
    %v135 = vpack.c.b16 %v127, %v126
    %144 = vmatpush.bf16.msra.mxu0 %v135
    %145 = vmatpush.bf16.msra.mxu0 %v134
    %146 = vmatpush.bf16.msra.mxu0 %v133
    %147 = vmatpush.bf16.msra.mxu0 %v132
    %148 = vmatpush.bf16.msra.mxu0 %v131
    %149 = vmatpush.bf16.msra.mxu0 %v130
    %150 = vmatpush.bf16.msra.mxu0 %v129
    %151 = vmatpush.bf16.msra.mxu0 %v128
    %152 = vmatmul.bf16.gmra.mxu0 %v75
    %v153 = vpop.f32.mrf.mxu0
    %v154 = vadd.f32 %v94, %v153
    %v155 = vpop.f32.mrf.mxu0
    %156 = vdwg.mxu0
    %v157 = vmax.f32 %v154, 0.0
    %v158 = vpack.c.bf16 %v157, %v157
    %v159 = vld [vmem:[#allocation5] sm:$0xf]
    %v160 = vld [vmem:[#allocation5 + $0x4] sm:$0xf]
    %v161 = vld [vmem:[#allocation5 + $0x8] sm:$0xf]
    %v162 = vld [vmem:[#allocation5 + $0xc] sm:$0xf]
    %v163 = vld [vmem:[#allocation5 + $0x10] sm:$0xf]
    %v164 = vld [vmem:[#allocation5 + $0x14] sm:$0xf]
    %v165 = vld [vmem:[#allocation5 + $0x18] sm:$0xf]
    %v166 = vld [vmem:[#allocation5 + $0x1c] sm:$0xf]
    %v167 = vld [vmem:[#allocation5 + $0x20] sm:$0xf]
    %v168 = vld [vmem:[#allocation5 + $0x24] sm:$0xf]
    %v169 = vld [vmem:[#allocation5 + $0x28] sm:$0xf]
    %v170 = vld [vmem:[#allocation5 + $0x2c] sm:$0xf]
    %v171 = vld [vmem:[#allocation5 + $0x30] sm:$0xf]
    %v172 = vld [vmem:[#allocation5 + $0x34] sm:$0xf]
    %v173 = vld [vmem:[#allocation5 + $0x38] sm:$0xf]
    %v174 = vld [vmem:[#allocation5 + $0x3c] sm:$0xf]
    %v175 = vld [vmem:[%s4] sm:$0x1]
    %v177 = vperm.slane %v175, 0
    %v195 = vunpack.c.l.b16 %v159
    %v196 = vunpack.c.l.b16 %v160
    %v197 = vunpack.c.l.b16 %v161
    %v198 = vunpack.c.l.b16 %v162
    %v199 = vunpack.c.l.b16 %v163
    %v200 = vunpack.c.l.b16 %v164
    %v201 = vunpack.c.l.b16 %v165
    %v202 = vunpack.c.l.b16 %v166
    %v203 = vunpack.c.l.b16 %v167
    %v204 = vunpack.c.l.b16 %v168
    %v205 = vunpack.c.l.b16 %v169
    %v206 = vunpack.c.l.b16 %v170
    %v207 = vunpack.c.l.b16 %v171
    %v208 = vunpack.c.l.b16 %v172
    %v209 = vunpack.c.l.b16 %v173
    %v210 = vunpack.c.l.b16 %v174
    %v211 = vpack.c.b16 %v196, %v195
    %v212 = vpack.c.b16 %v198, %v197
    %v213 = vpack.c.b16 %v200, %v199
    %v214 = vpack.c.b16 %v202, %v201
    %v215 = vpack.c.b16 %v204, %v203
    %v216 = vpack.c.b16 %v206, %v205
    %v217 = vpack.c.b16 %v208, %v207
    %v218 = vpack.c.b16 %v210, %v209
    %227 = vmatpush.bf16.msra.mxu0 %v218
    %228 = vmatpush.bf16.msra.mxu0 %v217
    %229 = vmatpush.bf16.msra.mxu0 %v216
    %230 = vmatpush.bf16.msra.mxu0 %v215
    %231 = vmatpush.bf16.msra.mxu0 %v214
    %232 = vmatpush.bf16.msra.mxu0 %v213
    %233 = vmatpush.bf16.msra.mxu0 %v212
    %234 = vmatpush.bf16.msra.mxu0 %v211
    %235 = vmatmul.bf16.gmra.mxu0 %v158
    %v236 = vpop.f32.mrf.mxu0
    %v237 = vadd.f32 %v177, %v236
    %v238 = vpop.f32.mrf.mxu0
    %239 = vdwg.mxu0
    %v240 = vmax.f32 %v237, 0.0
    %v241 = vpack.c.bf16 %v240, %v240
    %v242 = vld [vmem:[#allocation7] sm:$0xf]
    %v243 = vld [vmem:[#allocation7 + $0x4] sm:$0xf]
    %v244 = vld [vmem:[#allocation7 + $0x8] sm:$0xf]
    %v245 = vld [vmem:[#allocation7 + $0xc] sm:$0xf]
    %v246 = vld [vmem:[#allocation7 + $0x10] sm:$0xf]
    %v247 = vld [vmem:[#allocation7 + $0x14] sm:$0xf]
    %v248 = vld [vmem:[#allocation7 + $0x18] sm:$0xf]
    %v249 = vld [vmem:[#allocation7 + $0x1c] sm:$0xf]
    %v250 = vld [vmem:[#allocation7 + $0x20] sm:$0xf]
    %v251 = vld [vmem:[#allocation7 + $0x24] sm:$0xf]
    %v252 = vld [vmem:[#allocation7 + $0x28] sm:$0xf]
    %v253 = vld [vmem:[#allocation7 + $0x2c] sm:$0xf]
    %v254 = vld [vmem:[#allocation7 + $0x30] sm:$0xf]
    %v255 = vld [vmem:[#allocation7 + $0x34] sm:$0xf]
    %v256 = vld [vmem:[#allocation7 + $0x38] sm:$0xf]
    %v257 = vld [vmem:[#allocation7 + $0x3c] sm:$0xf]
    %v258 = vld [vmem:[%s6] sm:$0x1]
    %v260 = vperm.slane %v258, 0
    %v278 = vunpack.c.l.b16 %v242
    %v279 = vunpack.c.l.b16 %v243
    %v280 = vunpack.c.l.b16 %v244
    %v281 = vunpack.c.l.b16 %v245
    %v282 = vunpack.c.l.b16 %v246
    %v283 = vunpack.c.l.b16 %v247
    %v284 = vunpack.c.l.b16 %v248
    %v285 = vunpack.c.l.b16 %v249
    %v286 = vunpack.c.l.b16 %v250
    %v287 = vunpack.c.l.b16 %v251
    %v288 = vunpack.c.l.b16 %v252
    %v289 = vunpack.c.l.b16 %v253
    %v290 = vunpack.c.l.b16 %v254
    %v291 = vunpack.c.l.b16 %v255
    %v292 = vunpack.c.l.b16 %v256
    %v293 = vunpack.c.l.b16 %v257
    %v294 = vpack.c.b16 %v279, %v278
    %v295 = vpack.c.b16 %v281, %v280
    %v296 = vpack.c.b16 %v283, %v282
    %v297 = vpack.c.b16 %v285, %v284
    %v298 = vpack.c.b16 %v287, %v286
    %v299 = vpack.c.b16 %v289, %v288
    %v300 = vpack.c.b16 %v291, %v290
    %v301 = vpack.c.b16 %v293, %v292
    %310 = vmatpush.bf16.msra.mxu0 %v301
    %311 = vmatpush.bf16.msra.mxu0 %v300
    %312 = vmatpush.bf16.msra.mxu0 %v299
    %313 = vmatpush.bf16.msra.mxu0 %v298
    %314 = vmatpush.bf16.msra.mxu0 %v297
    %315 = vmatpush.bf16.msra.mxu0 %v296
    %316 = vmatpush.bf16.msra.mxu0 %v295
    %317 = vmatpush.bf16.msra.mxu0 %v294
    %318 = vmatmul.bf16.gmra.mxu0 %v241
    %v319 = vpop.f32.mrf.mxu0
    %v320 = vadd.f32 %v260, %v319
    %v321 = vpop.f32.mrf.mxu0
    %322 = vdwg.mxu0
    %323 = vst [vmem:[#allocation8] sm:$0xff] %v320
    // Predicated region
    $region42: #{mlp_forward.1} parent=1 // pred_check
      _
    $region43: #{mlp_forward.1} parent=1 // pred_check_branch
      %325 = sbr.rel (0) target = $region45
    $region44: #{mlp_forward.1} parent=1 // pred_region
      %327 = vsyncadd [#allocation4], 0
      %s329 = sshll.u32 [#allocation8], 4
      %s330 = int_to_ptr.vmem [resolvable:$true] %s329
      %s331 = sshll.u32 %s7, 4
      %s332 = int_to_ptr.hbm [resolvable:$true] %s331
      %334 = dma.vmem_to_hbm [thread:$0]  %s330, 128, %s332, [#allocation4]
    $region45: #{mlp_forward.1} parent=1 // pred_fallthru
      _
    // Predicated region
    $region46: #{mlp_forward.1} parent=1 // pred_check
      _
    $region47: #{mlp_forward.1} parent=1 // pred_check_branch
      %336 = sbr.rel (0) target = $region49
    $region48: #{mlp_forward.1} parent=1 // pred_region
      %338 = dma.done [#allocation4], 128
    $region49: #{mlp_forward.1} parent=1 // pred_fallthru
      _
    %339 = vsyncpa [#allocation3], 1
    %340 = vsyncpa [#allocation6], 1
    %341 = vsyncpa [#allocation4], 1

</llo_original>
